<compile_context>
chip_gen: v7x
topology: tpu7x:2x2x1
jax: 0.10.0
libtpu: 0.0.40
codegen_flags: <defaults>
</compile_context>

<pallas_src>
import jax
import jax.numpy as jnp
from jax import lax
from jax.experimental import pallas as pl
from jax.experimental.pallas import tpu as pltpu


def _fused_linear_kernel(x_ref, w_ref, b_ref, o_ref):
    # x_ref: (1, C, thw)  channel-major activation block (transpose fused here)
    # w_ref: (C, Np)      weight, embed dim padded to a multiple of 128
    # b_ref: (1, Np)      bias (padded)
    # o_ref: (1, thw, Np) output block (lane-dense last dim)
    x = x_ref[0]  # (C, thw)
    acc = lax.dot_general(
        x, w_ref[...],
        dimension_numbers=(((0,), (0,)), ((), ())),   # contract channel dims
        preferred_element_type=jnp.float32,
    )                                                 # (thw, Np)
    o_ref[0] = (acc + b_ref[...]).astype(o_ref.dtype)


def _pick_hw_tile(HW, C, itemsize, *, cap=512, max_x_block_bytes=2 * 1024 * 1024):
    """Spatial tile: full extent when small (always legal), else a multiple of
    128 chosen so the (C, thw) activation block stays within a VMEM budget."""
    if HW <= cap:
        return HW
    t = cap
    while t > 128 and C * t * itemsize > max_x_block_bytes:
        t //= 2
    return max(t, 128)


def linear_mlp_forward(x_nchw, w, b, *, hw_tile_cap=512):
    """Replicates LinearMLP.forward.

    x_nchw: (B, C, H, W) with C == input_dim
    w:      (input_dim, embed_dim)   (transposed vs. torch's (E, C) layout)
    b:      (embed_dim,)
    returns (B, H*W, embed_dim)
    """
    B, C, H, W = x_nchw.shape
    K, E = w.shape
    assert K == C, "weight input dim must match channel dim"
    HW = H * W

    # No wrapper-side transpose: kernel reads the channel-major layout directly.
    x_flat = x_nchw.reshape(B, C, HW)

    # Pad the embed dim to a multiple of 128 so the output store is lane-dense
    # (unmasked vst). Wrapper slices the padding back off.
    Np = max(128, ((E + 127) // 128) * 128)
    if Np != E:
        w_p = jnp.zeros((C, Np), w.dtype).at[:, :E].set(w)
        b_p = jnp.zeros((Np,), b.dtype).at[:E].set(b)
    else:
        w_p, b_p = w, b
    b2d = b_p.reshape(1, Np)

    thw = _pick_hw_tile(HW, C, jnp.dtype(x_nchw.dtype).itemsize, cap=hw_tile_cap)
    n_hw = pl.cdiv(HW, thw)

    out = pl.pallas_call(
        _fused_linear_kernel,
        out_shape=jax.ShapeDtypeStruct((B, HW, Np), x_nchw.dtype),
        grid_spec=pltpu.PrefetchScalarGridSpec(
            num_scalar_prefetch=0,
            grid=(B, n_hw),
            in_specs=[
                pl.BlockSpec((1, C, thw), lambda b_, j: (b_, 0, j)),
                pl.BlockSpec((C, Np), lambda b_, j: (0, 0)),
                pl.BlockSpec((1, Np), lambda b_, j: (0, 0)),
            ],
            out_specs=pl.BlockSpec((1, thw, Np), lambda b_, j: (b_, j, 0)),
        ),
        compiler_params=pltpu.CompilerParams(
            # Both axes independent -> shard across TensorCores on v7x megacore.
            dimension_semantics=("parallel", "parallel"),
            # Explicit, safe scoped-VMEM ceiling for v5e / v6e / v7x.
            vmem_limit_bytes=32 * 1024 * 1024,
        ),
    )(x_flat, w_p, b2d)

    if Np != E:
        out = out[:, :, :E]
    return out


if __name__ == "__main__":
    # Small shapes consistent with the module: input_dim = C = 32, embed_dim = 64
    B, C, H, W = 2, 32, 8, 8
    embed_dim = 64

    key = jax.random.PRNGKey(0)
    kx, kw, kb = jax.random.split(key, 3)

    x = jax.random.normal(kx, (B, C, H, W), dtype=jnp.float32)

    # Deterministic PyTorch-style Linear init: U(-1/sqrt(in), 1/sqrt(in)).
    # torch weight is (embed_dim, input_dim); we store it transposed as (C, E).
    bound = 1.0 / (C ** 0.5)
    w = jax.random.uniform(kw, (C, embed_dim), dtype=jnp.float32,
                           minval=-bound, maxval=bound)
    b = jax.random.uniform(kb, (embed_dim,), dtype=jnp.float32,
                           minval=-bound, maxval=bound)

    out = jax.block_until_ready(linear_mlp_forward(x, w, b))
    assert out.shape == (B, H * W, embed_dim)

    # Reference check in plain JAX (matches torch: flatten(2).transpose(1,2) @ W^T + b)
    ref = jnp.transpose(x.reshape(B, C, H * W), (0, 2, 1)) @ w + b
    assert jnp.allclose(out, ref, atol=1e-5, rtol=1e-5)

    print("KERNEL_OK")
</pallas_src>

<mosaic_0001>
module attributes {stable_mosaic.version = 11 : i64} {
  func.func @_fused_linear_kernel(%arg0: i32, %arg1: i32, %arg2: memref<1x32x64xf32, #tpu.memory_space<vmem>>, %arg3: memref<32x128xf32, #tpu.memory_space<vmem>>, %arg4: memref<1x128xf32, #tpu.memory_space<vmem>>, %arg5: memref<1x64x128xf32, #tpu.memory_space<vmem>>) attributes {dimension_semantics = [#tpu.dimension_semantics<parallel>, #tpu.dimension_semantics<parallel>], iteration_bounds = array<i64: 2, 1>, scalar_prefetch = 0 : i64, scratch_operands = 0 : i64, tpu.core_type = #tpu.core_type<tc>, window_params = [{transform_indices = @transform_0, window_bounds = array<i64: 1, 32, 64>}, {pipeline_mode = #tpu.pipeline_mode<synchronous>, transform_indices = @transform_1, window_bounds = array<i64: 32, 128>}, {pipeline_mode = #tpu.pipeline_mode<synchronous>, transform_indices = @transform_2, window_bounds = array<i64: 1, 128>}, {transform_indices = @transform_3, window_bounds = array<i64: 1, 64, 128>}]} {
    %c0 = arith.constant 0 : index
    %c0_0 = arith.constant 0 : index
    %c0_1 = arith.constant 0 : index
    %0 = vector.load %arg2[%c0, %c0_0, %c0_1] : memref<1x32x64xf32, #tpu.memory_space<vmem>>, vector<1x32x64xf32>
    %1 = vector.shape_cast %0 : vector<1x32x64xf32> to vector<32x64xf32>
    %c0_2 = arith.constant 0 : index
    %c0_3 = arith.constant 0 : index
    %2 = vector.load %arg3[%c0_2, %c0_3] : memref<32x128xf32, #tpu.memory_space<vmem>>, vector<32x128xf32>
    %cst = arith.constant dense<0.000000e+00> : vector<64x128xf32>
    %3 = tpu.matmul %1, %2, %cst {dimension_numbers = #tpu.dot_dimension_numbers<[0], [0], [1], [1], [0, 1, 1, 1], [], []>} : vector<32x64xf32>, vector<32x128xf32>, vector<64x128xf32> -> vector<64x128xf32>
    %c0_4 = arith.constant 0 : index
    %c0_5 = arith.constant 0 : index
    %4 = vector.load %arg4[%c0_4, %c0_5] : memref<1x128xf32, #tpu.memory_space<vmem>>, vector<1x128xf32>
    %5 = vector.broadcast %4 : vector<1x128xf32> to vector<64x128xf32>
    %6 = arith.addf %3, %5 : vector<64x128xf32>
    %c0_6 = arith.constant 0 : index
    %c0_7 = arith.constant 0 : index
    %c0_8 = arith.constant 0 : index
    %7 = vector.load %arg5[%c0_6, %c0_7, %c0_8] : memref<1x64x128xf32, #tpu.memory_space<vmem>>, vector<1x64x128xf32>
    %8 = vector.shape_cast %7 : vector<1x64x128xf32> to vector<64x128xf32>
    %9 = vector.shape_cast %6 : vector<64x128xf32> to vector<1x64x128xf32>
    tpu.vector_store %arg5[%c0_6, %c0_7, %c0_8], %9 {strides = array<i32>} : memref<1x64x128xf32, #tpu.memory_space<vmem>>, vector<1x64x128xf32>,
    return
  }
  func.func @transform_0(%arg0: i32, %arg1: i32) -> (i32, i32, i32) {
    %c0_i32 = arith.constant 0 : i32
    %c0_i32_0 = arith.constant 0 : i32
    return %arg0, %c0_i32, %arg1 : i32, i32, i32
  }
  func.func @transform_1(%arg0: i32, %arg1: i32) -> (i32, i32) {
    %c0_i32 = arith.constant 0 : i32
    %c0_i32_0 = arith.constant 0 : i32
    %c0_i32_1 = arith.constant 0 : i32
    return %c0_i32, %c0_i32_0 : i32, i32
  }
  func.func @transform_2(%arg0: i32, %arg1: i32) -> (i32, i32) {
    %c0_i32 = arith.constant 0 : i32
    %c0_i32_0 = arith.constant 0 : i32
    %c0_i32_1 = arith.constant 0 : i32
    return %c0_i32, %c0_i32_0 : i32, i32
  }
  func.func @transform_3(%arg0: i32, %arg1: i32) -> (i32, i32, i32) {
    %c0_i32 = arith.constant 0 : i32
    %c0_i32_0 = arith.constant 0 : i32
    return %arg0, %arg1, %c0_i32 : i32, i32, i32
  }
}

</mosaic_0001>

<llo_original>
// kernel: tpu_custom_call.1
$region0: #{tpu_custom_call.1}
  #allocation0 [shape = 'u32[]', space=smem, size = 0x4, offset = 0x4, fixed_abs, tag = 'smem constant byte address 0x4 - core index']
  #allocation1 [shape = 'u32[144,128]{1,0:T(1,128)}', space=vmem, size = 0x12000, scoped, tag = 'internal scratch']
  %s0 = inlined_call_operand.hbm [shape: f32[2,32,64], index: 0, kind: input, shape index: {}]
  %s1 = inlined_call_operand.hbm [shape: f32[32,128], index: 1, kind: input, shape index: {}]
  %s2 = inlined_call_operand.vmem [shape: f32[1,128], index: 2, kind: input, shape index: {}]
  %s3 = inlined_call_operand.hbm [shape: f32[2,64,128], index: 3, kind: output, shape index: {}]
  %s4 = sld [smem:[#allocation0]]
  $region53: #{tpu_custom_call.1} parent=0
    _
  %s6 = ssub.s32 1, %s4
  %s7 = scalar_select 0, %s6, %s4
  $region1: #{tpu_custom_call.1} parent=0
    #allocation2 [shape = 'u8[32768]{0}', space=vmem, size = 0x8000, scoped, tag = 'input window, operand 0']
    #allocation3 [shape = 's32[2]{0}', space=sflag, size = 0x8, scoped, tag = 'scoped memory for tpu_custom_call.1']
    #allocation4 [shape = 's32[2]{0}', space=sflag, size = 0x8, scoped, tag = 'scoped memory for tpu_custom_call.1']
    #allocation5 [shape = 'u8[16384]{0}', space=vmem, size = 0x4000, scoped, tag = 'input window, operand 1, single buffered']
    #allocation6 [shape = 's32[1]{0}', space=sflag, size = 0x4, scoped, tag = 'scoped memory for tpu_custom_call.1']
    #allocation7 [shape = 'u8[65536]{0}', space=vmem, size = 0x10000, scoped, tag = 'output window, operand 0']
    %8 = vsyncpa [#allocation3], 0
    %s9 = scalar_lea.sflag [#allocation3], 1
    %10 = vsyncpa %s9, 0
    %11 = vsyncpa [#allocation6], 0
    %12 = vsyncpa [#allocation4], 0
    %s13 = scalar_lea.sflag [#allocation4], 1
    %14 = vsyncpa %s13, 0
    loop: start=0, step=1, limit=4
    $region2: #{tpu_custom_call.1} parent=1 // loop_pre_header
      _
    $region3: #{tpu_custom_call.1} parent=1 // loop_header
      %s16 = sphi 0, %s20
      %p17 = scmp.ge.s32.totalorder %s16, 4
      %s23 = sphi 0, %s35
      %s24 = sphi 0, %s31
      %s25 = sphi 0, %s23
      %s26 = sphi 0, %s24
      %s27 = sphi 0, %s25
      %s28 = sphi 0, %s26
      %s40 = sphi 0, %s42
      %s43 = sphi 0, %s40
      %s44 = sphi 0, %s43
      %s60 = sphi 0, %s44
      %s64 = sphi 0, %s64
      %s66 = sphi 0, %s64
      %s67 = sphi 0, %s66
      %s81 = sphi 0, %s67
      %s85 = sphi 0, %s85
      %s87 = sphi 0, %s85
      %s88 = sphi 0, %s87
      %s102 = sphi 0, %s88
      %s110 = sphi 0, %s112
      %s113 = sphi 0, %s110
      %s114 = sphi 0, %s113
      %s130 = sphi 0, %s114
    $region4: #{tpu_custom_call.1} parent=1 // loop_header_branch
      %19 = sbr.rel (%p17) target = $region8
    $region5: #{tpu_custom_call.1} parent=1 // loop_body
      %s21 = ssub.s32 %s16, 1
      %s22 = ssub.s32 %s16, 2
      %s29 = sadd.s32 1, %s24
      %p30 = scmp.ge.s32.totalorder %s29, 1
      %s31 = scalar_select %p30, 0, %s29
      %s32 = sadd.s32 1, %s23
      %s33 = scalar_select %p30, %s32, %s23
      %p34 = scmp.ge.s32.totalorder %s33, 2
      %s35 = scalar_select %p34, 0, %s33
      %s36 = ssub.s32 %s23, %s35
      %s37 = ssub.s32 %s24, %s31
      %s38 = sor.u32 %s36, %s37
      %p39 = scmp.eq.s32.totalorder %s38, 0
      %s41 = sadd.s32 %s40, 1
      %s42 = scalar_select %p39, %s40, %s41
      %p45 = pneg %p39
      %p46 = scmp.eq.s32.totalorder %s16, 1
      %p47 = por %p45, %p46
      %p48 = scmp.ne.s32.totalorder %s40, %s43
      %p49 = scmp.eq.s32.totalorder %s16, 0
      %p50 = por %p48, %p49
      %p51 = scmp.ne.s32.totalorder %s40, %s43
      %p52 = scmp.eq.s32.totalorder %s21, 1
      %p53 = por %p51, %p52
      %p54 = scmp.ne.s32.totalorder %s43, %s44
      %p55 = scmp.eq.s32.totalorder %s21, 0
      %p56 = por %p54, %p55
      %p57 = scmp.ne.s32.totalorder %s43, %s44
      %p58 = scmp.eq.s32.totalorder %s22, 1
      %p59 = por %p57, %p58
      %p61 = scmp.ne.s32.totalorder %s44, %s60
      %p62 = scmp.eq.s32.totalorder %s22, 0
      %p63 = por %p61, %p62
      %s65 = sadd.s32 %s64, 1
      %p68 = scmp.eq.s32.totalorder %s16, 1
      %p69 = scmp.ne.s32.totalorder %s64, %s66
      %p70 = scmp.eq.s32.totalorder %s16, 0
      %p71 = por %p69, %p70
      %p72 = scmp.ne.s32.totalorder %s64, %s66
      %p73 = scmp.eq.s32.totalorder %s21, 1
      %p74 = por %p72, %p73
      %p75 = scmp.ne.s32.totalorder %s66, %s67
      %p76 = scmp.eq.s32.totalorder %s21, 0
      %p77 = por %p75, %p76
      %p78 = scmp.ne.s32.totalorder %s66, %s67
      %p79 = scmp.eq.s32.totalorder %s22, 1
      %p80 = por %p78, %p79
      %p82 = scmp.ne.s32.totalorder %s67, %s81
      %p83 = scmp.eq.s32.totalorder %s22, 0
      %p84 = por %p82, %p83
      %s86 = sadd.s32 %s85, 1
      %p89 = scmp.eq.s32.totalorder %s16, 1
      %p90 = scmp.ne.s32.totalorder %s85, %s87
      %p91 = scmp.eq.s32.totalorder %s16, 0
      %p92 = por %p90, %p91
      %p93 = scmp.ne.s32.totalorder %s85, %s87
      %p94 = scmp.eq.s32.totalorder %s21, 1
      %p95 = por %p93, %p94
      %p96 = scmp.ne.s32.totalorder %s87, %s88
      %p97 = scmp.eq.s32.totalorder %s21, 0
      %p98 = por %p96, %p97
      %p99 = scmp.ne.s32.totalorder %s87, %s88
      %p100 = scmp.eq.s32.totalorder %s22, 1
      %p101 = por %p99, %p100
      %p103 = scmp.ne.s32.totalorder %s88, %s102
      %p104 = scmp.eq.s32.totalorder %s22, 0
      %p105 = por %p103, %p104
      %s106 = ssub.s32 %s23, %s35
      %s107 = ssub.s32 %s24, %s31
      %s108 = sor.u32 %s106, %s107
      %p109 = scmp.eq.s32.totalorder %s108, 0
      %s111 = sadd.s32 %s110, 1
      %s112 = scalar_select %p109, %s110, %s111
      %p115 = pneg %p109
      %p116 = scmp.eq.s32.totalorder %s16, 1
      %p117 = por %p115, %p116
      %p118 = scmp.ne.s32.totalorder %s110, %s113
      %p119 = scmp.eq.s32.totalorder %s16, 0
      %p120 = por %p118, %p119
      %p121 = scmp.ne.s32.totalorder %s110, %s113
      %p122 = scmp.eq.s32.totalorder %s21, 1
      %p123 = por %p121, %p122
      %p124 = scmp.ne.s32.totalorder %s113, %s114
      %p125 = scmp.eq.s32.totalorder %s21, 0
      %p126 = por %p124, %p125
      %p127 = scmp.ne.s32.totalorder %s113, %s114
      %p128 = scmp.eq.s32.totalorder %s22, 1
      %p129 = por %p127, %p128
      %p131 = scmp.ne.s32.totalorder %s114, %s130
      %p132 = scmp.eq.s32.totalorder %s22, 0
      %p133 = por %p131, %p132
      %p134 = scmp.le.s32.totalorder 1, %s16
      %p135 = scmp.lt.s32.totalorder %s16, 3
      %p136 = pnand %p134, %p135
      %p137 = pneg %p136
      // Predicated region
      $region9: #{tpu_custom_call.1} parent=5 // pred_check
        _
      $region10: #{tpu_custom_call.1} parent=5 // pred_check_branch
        %139 = sbr.rel (%p136) target = $region12
      $region11: #{tpu_custom_call.1} parent=5 // pred_region
        %s140 = ssub.s32 %s16, 1
        // Predicated region
        $region13: #{tpu_custom_call.1} parent=11 // pred_check
          %p141 = pneg %p77
        $region14: #{tpu_custom_call.1} parent=11 // pred_check_branch
          %143 = sbr.rel (%p141) target = $region16
        $region15: #{tpu_custom_call.1} parent=11 // pred_region
          %s145 = ssub.s32 512, 512
          %146 = vsyncadd [#allocation6], %s145
          %s147 = sshll.u32 [#allocation5], 4
          %s148 = int_to_ptr.vmem [resolvable:$true] %s147
          %153 = dma.hbm_to_vmem [thread:$0]  %s1, 512, %s148, [#allocation6], 128, 128, 8
        $region16: #{tpu_custom_call.1} parent=11 // pred_fallthru
          _
        // Predicated region
        $region17: #{tpu_custom_call.1} parent=11 // pred_check
          %p154 = pneg %p98
        $region18: #{tpu_custom_call.1} parent=11 // pred_check_branch
          %156 = sbr.rel (%p154) target = $region20
        $region19: #{tpu_custom_call.1} parent=11 // pred_region
          _
        $region20: #{tpu_custom_call.1} parent=11 // pred_fallthru
          _
      $region12: #{tpu_custom_call.1} parent=5 // pred_fallthru
        _
      %p157 = scmp.lt.s32.totalorder %s16, 2
      // Predicated region
      $region21: #{tpu_custom_call.1} parent=5 // pred_check
        %p158 = pneg %p157
      $region22: #{tpu_custom_call.1} parent=5 // pred_check_branch
        %160 = sbr.rel (%p158) target = $region24
      $region23: #{tpu_custom_call.1} parent=5 // pred_region
        // Predicated region
        $region25: #{tpu_custom_call.1} parent=23 // pred_check
          %p161 = pneg %p50
        $region26: #{tpu_custom_call.1} parent=23 // pred_check_branch
          %163 = sbr.rel (%p161) target = $region28
        $region27: #{tpu_custom_call.1} parent=23 // pred_region
          %s164 = sand.u32 %s40, 1
          %s165 = scalar_lea.sflag [#allocation3], %s164
          %s166 = sand.u32 %s40, 1
          %s167 = smul.addr %s166, 32
          %s168 = scalar_lea.vmem [#allocation2], %s167
          %s170 = ssub.s32 512, 512
          %171 = vsyncadd %s165, %s170
          %s172 = smul.addr %s23, 4
          %s173 = sadd.s32 %s24, %s172
          %s174 = smul.addr %s173, 128
          %s175 = scalar_lea.hbm %s0, %s174
          %s176 = sshll.u32 %s168, 4
          %s177 = int_to_ptr.vmem [resolvable:$true] %s176
          %182 = dma.hbm_to_vmem [thread:$0]  %s175, 512, %s177, %s165, 128, 128, 8
        $region28: #{tpu_custom_call.1} parent=23 // pred_fallthru
          _
      $region24: #{tpu_custom_call.1} parent=5 // pred_fallthru
        _
      %p183 = scmp.le.s32.totalorder 1, %s16
      %p184 = scmp.lt.s32.totalorder %s16, 3
      %p185 = pnand %p183, %p184
      %p186 = pneg %p185
      // Predicated region
      $region29: #{tpu_custom_call.1} parent=5 // pred_check
        _
      $region30: #{tpu_custom_call.1} parent=5 // pred_check_branch
        %188 = sbr.rel (%p185) target = $region32
      $region31: #{tpu_custom_call.1} parent=5 // pred_region
        %s189 = ssub.s32 %s16, 1
        %s190 = sand.u32 %s43, 1
        %s191 = scalar_lea.sflag [#allocation3], %s190
        %s192 = sand.u32 %s43, 1
        %s193 = smul.addr %s192, 32
        %s194 = scalar_lea.vmem [#allocation2], %s193
        // Predicated region
        $region33: #{tpu_custom_call.1} parent=31 // pred_check
          %p195 = pneg %p56
        $region34: #{tpu_custom_call.1} parent=31 // pred_check_branch
          %197 = sbr.rel (%p195) target = $region36
        $region35: #{tpu_custom_call.1} parent=31 // pred_region
          %198 = dma.done %s191, 512
        $region36: #{tpu_custom_call.1} parent=31 // pred_fallthru
          _
        // Predicated region
        $region37: #{tpu_custom_call.1} parent=31 // pred_check
          %p199 = pneg %p77
        $region38: #{tpu_custom_call.1} parent=31 // pred_check_branch
          %201 = sbr.rel (%p199) target = $region40
        $region39: #{tpu_custom_call.1} parent=31 // pred_region
          %202 = dma.done [#allocation6], 512
        $region40: #{tpu_custom_call.1} parent=31 // pred_fallthru
          _
        %s203 = sand.u32 %s43, 1
        %s204 = scalar_lea.sflag [#allocation3], %s203
        %s205 = sand.u32 %s43, 1
        %s206 = smul.addr %s205, 32
        %s207 = scalar_lea.vmem [#allocation2], %s206
        %p208 = pneg %p56
        %p209 = pneg %p53
        %p210 = pneg %p77
        %p211 = pneg %p74
        %p212 = pneg %p98
        %p213 = pneg %p95
        %p214 = pneg %p126
        %p215 = pneg %p123
        %s216 = sand.u32 %s113, 1
        %s217 = scalar_lea.sflag [#allocation4], %s216
        %s218 = sand.u32 %s113, 1
        %s219 = smul.addr %s218, 64
        %s220 = scalar_lea.vmem [#allocation7], %s219
        %s221 = smul.u32 8, %s26
        %v222 = vld [vmem:[%s194] sm:$0xff]
        %v223 = vld [vmem:[%s194 + $0x8] sm:$0xff]
        %v224 = vld [vmem:[%s194 + $0x10] sm:$0xff]
        %v225 = vld [vmem:[%s194 + $0x18] sm:$0xff]
        %v226 = vld [vmem:[#allocation5] sm:$0xff]
        %v227 = vld [vmem:[#allocation5 + $0x8] sm:$0xff]
        %v228 = vld [vmem:[#allocation5 + $0x10] sm:$0xff]
        %v229 = vld [vmem:[#allocation5 + $0x18] sm:$0xff]
        %v230 = vld [vmem:[%s2] sm:$0x1]
        %v232 = vlaneseq
        %v233 = vshrl.u32 %v232, 7
        %v234 = vsub.s32 0, %v233
        %v235 = vrot.slane %v230, %v234
        %237 = vxpose.xlu0.b32.start [1/16] %v222, 128
        %238 = vxpose.xlu0.b32.cont [2/16] %v223, 128
        %239 = vxpose.xlu0.b32.cont [3/16] %v224, 128
        %240 = vxpose.xlu0.b32.cont [4/16] %v225, 128
        %241 = vxpose.xlu0.b32.cont [5/16] 0.0, 128
        %242 = vxpose.xlu0.b32.cont [6/16] 0.0, 128
        %243 = vxpose.xlu0.b32.cont [7/16] 0.0, 128
        %244 = vxpose.xlu0.b32.cont [8/16] 0.0, 128
        %245 = vxpose.xlu0.b32.cont [9/16] 0.0, 128
        %246 = vxpose.xlu0.b32.cont [10/16] 0.0, 128
        %247 = vxpose.xlu0.b32.cont [11/16] 0.0, 128
        %248 = vxpose.xlu0.b32.cont [12/16] 0.0, 128
        %249 = vxpose.xlu0.b32.cont [13/16] 0.0, 128
        %250 = vxpose.xlu0.b32.cont [14/16] 0.0, 128
        %251 = vxpose.xlu0.b32.cont [15/16] 0.0, 128
        %252 = vxpose.xlu0.b32.end [16/16] 0.0, 128
        %v253 = vpop.trf.xlu0
        %v254 = vpop.trf.xlu0
        %v255 = vpop.trf.xlu0
        %v256 = vpop.trf.xlu0
        %v257 = vpop.trf.xlu0
        %v258 = vpop.trf.xlu0
        %v259 = vpop.trf.xlu0
        %v260 = vpop.trf.xlu0
        %v261 = vpop.trf.xlu0
        %v262 = vpop.trf.xlu0
        %v263 = vpop.trf.xlu0
        %v264 = vpop.trf.xlu0
        %v265 = vpop.trf.xlu0
        %v266 = vpop.trf.xlu0
        %v267 = vpop.trf.xlu0
        %v268 = vpop.trf.xlu0
        %vm269 = vcmask 261120
        %v271 = vsel %vm269, %v253, 0
        %v274 = vsel %vm269, %v254, 0
        %v277 = vsel %vm269, %v255, 0
        %v280 = vsel %vm269, %v256, 0
        %v283 = vsel %vm269, %v257, 0
        %v286 = vsel %vm269, %v258, 0
        %v289 = vsel %vm269, %v259, 0
        %v292 = vsel %vm269, %v260, 0
        %294 = vmatprep.subr.mxu0 0.0
        %295 = vmatpush1.msra.mxu0 %v226
        %296 = vmatprep.subr.mxu0 0.0
        %297 = vmatpush1.msra.mxu0 %v227
        %298 = vmatprep.subr.mxu0 0.0
        %299 = vmatpush1.msra.mxu0 %v228
        %300 = vmatprep.subr.mxu0 0.0
        %301 = vmatpush1.msra.mxu0 %v229
        %302 = vmatprep.subr.mxu0 0.0
        %303 = vmatpush1.msra.mxu0 0.0
        %304 = vmatprep.subr.mxu0 0.0
        %305 = vmatpush1.msra.mxu0 0.0
        %306 = vmatprep.subr.mxu0 0.0
        %307 = vmatpush1.msra.mxu0 0.0
        %308 = vmatprep.subr.mxu0 0.0
        %309 = vmatpush1.msra.mxu0 0.0
        %310 = vmatprep.subr.mxu0 0.0
        %311 = vmatpush1.msra.mxu0 0.0
        %312 = vmatprep.subr.mxu0 0.0
        %313 = vmatpush1.msra.mxu0 0.0
        %314 = vmatprep.subr.mxu0 0.0
        %315 = vmatpush1.msra.mxu0 0.0
        %316 = vmatprep.subr.mxu0 0.0
        %317 = vmatpush1.msra.mxu0 0.0
        %318 = vmatprep.subr.mxu0 0.0
        %319 = vmatpush1.msra.mxu0 0.0
        %320 = vmatprep.subr.mxu0 0.0
        %321 = vmatpush1.msra.mxu0 0.0
        %322 = vmatprep.subr.mxu0 0.0
        %323 = vmatpush1.msra.mxu0 0.0
        %324 = vmatprep.subr.mxu0 0.0
        %325 = vmatpush1.msra.mxu0 0.0
        %326 = vmatprep.subr.mxu0 0.0
        %327 = vmatpush1.msra.mxu0 0.0
        %328 = vmatprep.subr.mxu0 0.0
        %329 = vmatpush1.msra.mxu0 0.0
        %330 = vmatprep.subr.mxu0 0.0
        %331 = vmatpush1.msra.mxu0 0.0
        %332 = vmatprep.subr.mxu0 0.0
        %333 = vmatpush1.msra.mxu0 0.0
        %334 = vmatprep.subr.mxu0 0.0
        %335 = vmatpush1.msra.mxu0 0.0
        %336 = vmatprep.subr.mxu0 0.0
        %337 = vmatpush1.msra.mxu0 0.0
        %338 = vmatprep.subr.mxu0 0.0
        %339 = vmatpush1.msra.mxu0 0.0
        %340 = vmatprep.subr.mxu0 0.0
        %341 = vmatpush1.msra.mxu0 0.0
        %342 = vmatprep.subr.mxu0 0.0
        %343 = vmatpush1.msra.mxu0 0.0
        %344 = vmatprep.subr.mxu0 0.0
        %345 = vmatpush1.msra.mxu0 0.0
        %346 = vmatprep.subr.mxu0 0.0
        %347 = vmatpush1.msra.mxu0 0.0
        %348 = vmatprep.subr.mxu0 0.0
        %349 = vmatpush1.msra.mxu0 0.0
        %350 = vmatprep.subr.mxu0 0.0
        %351 = vmatpush1.msra.mxu0 0.0
        %352 = vmatprep.subr.mxu0 0.0
        %353 = vmatpush1.msra.mxu0 0.0
        %354 = vmatprep.subr.mxu0 0.0
        %355 = vmatpush1.msra.mxu0 0.0
        %356 = vmatprep.subr.mxu0 0.0
        %357 = vmatpush1.msra.mxu0 0.0
        %358 = vmatprep.mubr.f32.mxu0 0.0
        %359 = vmatmul.mubr.f32.gmra.mrb[0].mxu0 %v271
        %v360 = vpop.f32.mrb[0].mxu0
        %v361 = vadd.f32 %v235, %v360
        %v362 = vpop.f32.mrb[0].mxu0
        %363 = vmatprep.mubr.f32.mxu0 0.0
        %364 = vmatmul.mubr.f32.gmra.mrb[0].mxu0 %v274
        %v365 = vpop.f32.mrb[0].mxu0
        %v366 = vadd.f32 %v235, %v365
        %v367 = vpop.f32.mrb[0].mxu0
        %368 = vmatprep.mubr.f32.mxu0 0.0
        %369 = vmatmul.mubr.f32.gmra.mrb[0].mxu0 %v277
        %v370 = vpop.f32.mrb[0].mxu0
        %v371 = vadd.f32 %v235, %v370
        %v372 = vpop.f32.mrb[0].mxu0
        %373 = vmatprep.mubr.f32.mxu0 0.0
        %374 = vmatmul.mubr.f32.gmra.mrb[0].mxu0 %v280
        %v375 = vpop.f32.mrb[0].mxu0
        %v376 = vadd.f32 %v235, %v375
        %v377 = vpop.f32.mrb[0].mxu0
        %378 = vmatprep.mubr.f32.mxu0 0.0
        %379 = vmatmul.mubr.f32.gmra.mrb[0].mxu0 %v283
        %v380 = vpop.f32.mrb[0].mxu0
        %v381 = vadd.f32 %v235, %v380
        %v382 = vpop.f32.mrb[0].mxu0
        %383 = vmatprep.mubr.f32.mxu0 0.0
        %384 = vmatmul.mubr.f32.gmra.mrb[0].mxu0 %v286
        %v385 = vpop.f32.mrb[0].mxu0
        %v386 = vadd.f32 %v235, %v385
        %v387 = vpop.f32.mrb[0].mxu0
        %388 = vmatprep.mubr.f32.mxu0 0.0
        %389 = vmatmul.mubr.f32.gmra.mrb[0].mxu0 %v289
        %v390 = vpop.f32.mrb[0].mxu0
        %v391 = vadd.f32 %v235, %v390
        %v392 = vpop.f32.mrb[0].mxu0
        %393 = vmatprep.mubr.f32.mxu0 0.0
        %394 = vmatmul.mubr.f32.gmra.mrb[0].mxu0 %v292
        %v395 = vpop.f32.mrb[0].mxu0
        %v396 = vadd.f32 %v235, %v395
        %v397 = vpop.f32.mrb[0].mxu0
        %398 = vdwg.mxu0
        %399 = vst [vmem:[%s220] sm:$0xff] %v361
        %400 = vst [vmem:[%s220 + $0x8] sm:$0xff] %v366
        %401 = vst [vmem:[%s220 + $0x10] sm:$0xff] %v371
        %402 = vst [vmem:[%s220 + $0x18] sm:$0xff] %v376
        %403 = vst [vmem:[%s220 + $0x20] sm:$0xff] %v381
        %404 = vst [vmem:[%s220 + $0x28] sm:$0xff] %v386
        %405 = vst [vmem:[%s220 + $0x30] sm:$0xff] %v391
        %406 = vst [vmem:[%s220 + $0x38] sm:$0xff] %v396
        %s407 = sand.u32 %s113, 1
        %s408 = scalar_lea.sflag [#allocation4], %s407
        %s409 = sand.u32 %s113, 1
        %s410 = smul.addr %s409, 64
        %s411 = scalar_lea.vmem [#allocation7], %s410
        // Predicated region
        $region41: #{tpu_custom_call.1} parent=31 // pred_check
          %p412 = pneg %p123
        $region42: #{tpu_custom_call.1} parent=31 // pred_check_branch
          %414 = sbr.rel (%p412) target = $region44
        $region43: #{tpu_custom_call.1} parent=31 // pred_region
          %s415 = smul.u32 8, %s26
          %s417 = ssub.s32 1024, 1024
          %418 = vsyncadd %s408, %s417
          %s419 = smul.addr %s25, 8
          %s420 = sadd.s32 %s415, %s419
          %s421 = smul.addr %s420, 128
          %s422 = scalar_lea.hbm %s3, %s421
          %s423 = sshll.u32 %s411, 4
          %s424 = int_to_ptr.vmem [resolvable:$true] %s423
          %429 = dma.vmem_to_hbm [thread:$0]  %s424, 1024, %s422, %s408, 128, 128, 8
        $region44: #{tpu_custom_call.1} parent=31 // pred_fallthru
          _
      $region32: #{tpu_custom_call.1} parent=5 // pred_fallthru
        _
      %p430 = scmp.le.s32.totalorder 2, %s16
      // Predicated region
      $region45: #{tpu_custom_call.1} parent=5 // pred_check
        %p431 = pneg %p430
      $region46: #{tpu_custom_call.1} parent=5 // pred_check_branch
        %433 = sbr.rel (%p431) target = $region48
      $region47: #{tpu_custom_call.1} parent=5 // pred_region
        %s434 = ssub.s32 %s16, 2
        // Predicated region
        $region49: #{tpu_custom_call.1} parent=47 // pred_check
          %p435 = pneg %p129
        $region50: #{tpu_custom_call.1} parent=47 // pred_check_branch
          %437 = sbr.rel (%p435) target = $region52
        $region51: #{tpu_custom_call.1} parent=47 // pred_region
          %s438 = sand.u32 %s114, 1
          %s439 = scalar_lea.sflag [#allocation4], %s438
          %s440 = sand.u32 %s114, 1
          %s441 = smul.addr %s440, 64
          %s442 = scalar_lea.vmem [#allocation7], %s441
          %443 = dma.done %s439, 1024
        $region52: #{tpu_custom_call.1} parent=47 // pred_fallthru
          _
      $region48: #{tpu_custom_call.1} parent=5 // pred_fallthru
        _
    $region6: #{tpu_custom_call.1} parent=1 // loop_footer
      %s20 = sadd.s32 1, %s16
    $region7: #{tpu_custom_call.1} parent=1 // loop_footer_branch
      %15 = sbr.rel target = $region3
    $region8: #{tpu_custom_call.1} parent=1 // loop_exit
      _
    %444 = vsyncpa [#allocation3], 1
    %s445 = scalar_lea.sflag [#allocation3], 1
    %446 = vsyncpa %s445, 1
    %447 = vsyncpa [#allocation6], 1
    %448 = vsyncpa [#allocation4], 1
    %s449 = scalar_lea.sflag [#allocation4], 1
    %450 = vsyncpa %s449, 1

</llo_original>
